<compile_context>
chip_gen: v5e
topology: v5e:2x2
jax: 0.10.0
libtpu: 0.0.40
codegen_flags: <defaults>
</compile_context>

<pallas_src>
import functools

import jax
import jax.numpy as jnp
from jax.experimental import pallas as pl
from jax.experimental.pallas import tpu as pltpu


def _round_up(a, m):
    return ((a + m - 1) // m) * m


# ----------------------------- kernels -------------------------------------


def _ln_tanh_store(y, p_ref, o_ref, *, eps, inv_n):
    """LayerNorm (single-pass stats, biased var) + affine + tanh; store to o_ref."""
    s1 = jnp.sum(y, axis=-1, keepdims=True)
    s2 = jnp.sum(y * y, axis=-1, keepdims=True)
    mean = s1 * inv_n
    var = jnp.maximum(s2 * inv_n - mean * mean, 0.0)   # clamp: cancellation / pad rows
    inv_std = jax.lax.rsqrt(var + eps)
    scale = inv_std * p_ref[1:2, :]                    # fold gamma into inv_std
    o_ref[...] = jnp.tanh((y - mean) * scale + p_ref[2:3, :]).astype(o_ref.dtype)


def _mm(x_ref, w_ref):
    x = x_ref[...]
    if x.dtype != w_ref.dtype:                         # bf16 x bf16 -> native MXU path
        x = x.astype(w_ref.dtype)
    return jnp.dot(x, w_ref[...], preferred_element_type=jnp.float32)


def _rl_projection_kernel(x_ref, w_ref, p_ref, o_ref, *, eps, inv_n):
    """Weight fully VMEM-resident; grid = (row tiles,)."""
    y = _mm(x_ref, w_ref) + p_ref[0:1, :]              # bias = row 0 of packed params
    _ln_tanh_store(y, p_ref, o_ref, eps=eps, inv_n=inv_n)


def _rl_projection_kernel_ktiled(x_ref, w_ref, p_ref, o_ref, acc_ref, *, eps, inv_n):
    """d_in tiled; grid = (row tiles, k tiles); f32 accumulator in VMEM scratch."""
    k = pl.program_id(1)

    @pl.when(k == 0)
    def _():
        acc_ref[...] = jnp.zeros_like(acc_ref)

    acc_ref[...] += _mm(x_ref, w_ref)

    @pl.when(k == pl.num_programs(1) - 1)
    def _():
        y = acc_ref[...] + p_ref[0:1, :]
        _ln_tanh_store(y, p_ref, o_ref, eps=eps, inv_n=inv_n)


# ----------------------------- wrapper --------------------------------------


def rl_projection(x, w_t, params, *, eps=1e-5, tb=2048,
                  out_dtype=jnp.float32, max_weight_vmem_bytes=None):
    """x: [B, d_in]; w_t: [d_in, d_out] PRE-transposed Linear weight (bf16 or f32);
    params: [3, d_out] f32 rows = (bias, gamma, beta).  Returns [B, d_out]."""
    B, d_in = x.shape
    d_in_w, d_out = w_t.shape
    assert d_in_w == d_in
    assert params.shape == (3, d_out)

    x_bytes = jnp.dtype(x.dtype).itemsize
    w_bytes = jnp.dtype(w_t.dtype).itemsize
    o_bytes = jnp.dtype(out_dtype).itemsize
    p_bytes = jnp.dtype(params.dtype).itemsize

    # Generation-aware VMEM budget (v5e/v6e: 128 MiB, v7x: 64 MiB per core).
    try:
        phys_vmem = int(pltpu.get_tpu_info().vmem_capacity_bytes)
    except Exception:
        phys_vmem = 64 << 20                       # conservative (v7x) fallback
    vmem_budget = max(phys_vmem * 3 // 4, 16 << 20)

    # --- K (d_in) tiling: only when the double-buffered resident weight would
    #     not fit the budget (large d_in*d_out on v7x). TK must divide d_in so
    #     no garbage from padded K blocks enters the accumulation.
    if max_weight_vmem_bytes is None:
        max_weight_vmem_bytes = vmem_budget // 2
    TK = d_in
    if 2 * d_in * d_out * w_bytes > max_weight_vmem_bytes and d_in % 128 == 0:
        tk_cap = max(128, (max_weight_vmem_bytes // (2 * d_out * w_bytes)) // 128 * 128)
        tk_cap = min(tk_cap, d_in)
        TK = 128
        t = 128
        while t <= tk_cap:
            if d_in % t == 0:
                TK = t
            t += 128
    n_k = pl.cdiv(d_in, TK)
    ktiled = n_k > 1

    # --- batch (row) tile ---
    TB = min(tb, B)
    if B >= 16:
        # >= 2 grid steps along the "parallel" axis -> both v7x TensorCores work.
        TB = min(TB, _round_up(pl.cdiv(B, 2), 8))
    if TB < B:
        TB = max(8, (TB // 8) * 8)                 # keep sublane-aligned when tiling

    def vmem_needed(tb_):
        n = (2 * tb_ * TK * x_bytes                # x tiles (double-buffered)
             + 2 * TK * d_out * w_bytes            # weight tiles (double-buffered)
             + 2 * tb_ * d_out * o_bytes           # output tiles (double-buffered)
             + 2 * 3 * d_out * p_bytes)            # packed bias/gamma/beta
        if ktiled:
            n += tb_ * d_out * 4                   # f32 accumulator scratch
        return n

    while TB > 8 and vmem_needed(TB) > vmem_budget:
        TB = max(8, ((TB // 2) // 8) * 8)
    n_rows = pl.cdiv(B, TB)

    vmem_limit = int(min(max(vmem_needed(TB) + (2 << 20), 32 << 20), vmem_budget))

    inv_n = 1.0 / d_out

    if not ktiled:
        kernel = functools.partial(_rl_projection_kernel, eps=eps, inv_n=inv_n)
        grid_spec = pltpu.PrefetchScalarGridSpec(
            num_scalar_prefetch=0,
            grid=(n_rows,),
            in_specs=[
                pl.BlockSpec((TB, d_in), lambda i: (i, 0)),      # x: tiled rows
                pl.BlockSpec((d_in, d_out), lambda i: (0, 0)),   # weight: resident
                pl.BlockSpec((3, d_out), lambda i: (0, 0)),      # packed b/gamma/beta
            ],
            out_specs=pl.BlockSpec((TB, d_out), lambda i: (i, 0)),
        )
        dims = ("parallel",)
    else:
        kernel = functools.partial(_rl_projection_kernel_ktiled, eps=eps, inv_n=inv_n)
        grid_spec = pltpu.PrefetchScalarGridSpec(
            num_scalar_prefetch=0,
            grid=(n_rows, n_k),
            in_specs=[
                pl.BlockSpec((TB, TK), lambda i, k: (i, k)),
                pl.BlockSpec((TK, d_out), lambda i, k: (k, 0)),
                pl.BlockSpec((3, d_out), lambda i, k: (0, 0)),
            ],
            out_specs=pl.BlockSpec((TB, d_out), lambda i, k: (i, 0)),
            scratch_shapes=[pltpu.VMEM((TB, d_out), jnp.float32)],
        )
        dims = ("parallel", "arbitrary")

    return pl.pallas_call(
        kernel,
        out_shape=jax.ShapeDtypeStruct((B, d_out), out_dtype),
        grid_spec=grid_spec,
        compiler_params=pltpu.CompilerParams(
            dimension_semantics=dims,
            vmem_limit_bytes=vmem_limit,
        ),
    )(x, w_t, params)


# ----------------------------- params / references --------------------------


def _orthogonal(key, rows, cols, dtype=jnp.float32):
    """Deterministic orthogonal init (semantics of nn.init.orthogonal_)."""
    n, m = max(rows, cols), min(rows, cols)
    a = jax.random.normal(key, (n, m), dtype=jnp.float32)
    q, r = jnp.linalg.qr(a)
    q = q * jnp.sign(jnp.diagonal(r))[None, :]
    if rows < cols:
        q = q.T
    return q[:rows, :cols].astype(dtype)


def init_rl_projection_params(key, d_in, d_out, *, weight_dtype=jnp.bfloat16):
    """Mirrors weight_init: orthogonal Linear weight, zero bias; LN gamma=1, beta=0.
    Weight is transposed ONCE and stored in `weight_dtype` (bf16 by default) so the
    kernel sees a lane-dense [d_in, d_out] operand at half the DMA/VMEM cost."""
    w = _orthogonal(key, d_out, d_in, jnp.float32)   # PyTorch Linear layout [d_out, d_in]
    w_t = jnp.asarray(w.T, dtype=weight_dtype)       # [d_in, d_out] for the kernel
    params = jnp.stack([
        jnp.zeros((d_out,), jnp.float32),            # bias
        jnp.ones((d_out,), jnp.float32),             # gamma
        jnp.zeros((d_out,), jnp.float32),            # beta
    ])
    return w, w_t, params


def _layer_norm_tanh(y, gamma, beta, eps):
    mean = y.mean(axis=-1, keepdims=True)
    var = ((y - mean) ** 2).mean(axis=-1, keepdims=True)
    return jnp.tanh((y - mean) / jnp.sqrt(var + eps) * gamma + beta)


def _reference_quantized(x, w_t, params, eps=1e-5):
    """Same numerics as the kernel: x/weight rounded to the stored weight dtype,
    f32 matmul/accumulation."""
    xq = x.astype(w_t.dtype).astype(jnp.float32)
    wq = w_t.astype(jnp.float32)
    y = xq @ wq + params[0]
    return _layer_norm_tanh(y, params[1], params[2], eps)


def _reference_f32(x, w, params, eps=1e-5):
    """Full-f32 forward of the PyTorch module (weight in [d_out, d_in] layout)."""
    y = x @ w.T + params[0]
    return _layer_norm_tanh(y, params[1], params[2], eps)


# ----------------------------- self-test -------------------------------------


if __name__ == "__main__":
    key = jax.random.PRNGKey(0)
    k1, k2, k3, k4 = jax.random.split(key, 4)

    # Case 1: RLProjection(in_shape=(32,), out_dim=128), small batch
    # (resident-weight path, single row tile).
    B, D_IN, D_OUT = 8, 32, 128
    x = jax.random.normal(k1, (B, D_IN), dtype=jnp.float32)
    w, w_t, params = init_rl_projection_params(k2, D_IN, D_OUT)

    out = jax.block_until_ready(rl_projection(x, w_t, params))
    assert out.shape == (B, D_OUT) and out.dtype == jnp.float32
    ref_q = _reference_quantized(x, w_t, params)
    assert jnp.allclose(out, ref_q, atol=2e-5, rtol=1e-5), "mismatch vs quantized reference"
    ref_f = _reference_f32(x, w, params)
    assert jnp.allclose(out, ref_f, atol=5e-2), "mismatch vs f32 module reference"

    # Case 2: force the K-tiled accumulator path (used on v7x when the weight
    # cannot stay VMEM-resident) with >=2 row tiles and a partial last tile.
    B2, D_IN2, D_OUT2 = 40, 256, 128
    x2 = jax.random.normal(k3, (B2, D_IN2), dtype=jnp.float32)
    w2, w2_t, params2 = init_rl_projection_params(k4, D_IN2, D_OUT2)

    out2 = jax.block_until_ready(
        rl_projection(x2, w2_t, params2, max_weight_vmem_bytes=1))   # force TK < d_in
    ref2 = _reference_quantized(x2, w2_t, params2)
    assert out2.shape == (B2, D_OUT2)
    assert jnp.allclose(out2, ref2, atol=2e-5, rtol=1e-5), "mismatch (K-tiled path)"

    print("KERNEL_OK")
</pallas_src>

<mosaic_0001>
module attributes {stable_mosaic.version = 11 : i64} {
  func.func @_rl_projection_kernel(%arg0: i32, %arg1: memref<8x32xf32, #tpu.memory_space<vmem>>, %arg2: memref<32x128xbf16, #tpu.memory_space<vmem>>, %arg3: memref<3x128xf32, #tpu.memory_space<vmem>>, %arg4: memref<8x128xf32, #tpu.memory_space<vmem>>) attributes {dimension_semantics = [#tpu.dimension_semantics<parallel>], iteration_bounds = array<i64: 1>, scalar_prefetch = 0 : i64, scratch_operands = 0 : i64, tpu.core_type = #tpu.core_type<tc>, window_params = [{transform_indices = @transform_0, window_bounds = array<i64: 8, 32>}, {pipeline_mode = #tpu.pipeline_mode<synchronous>, transform_indices = @transform_1, window_bounds = array<i64: 32, 128>}, {pipeline_mode = #tpu.pipeline_mode<synchronous>, transform_indices = @transform_2, window_bounds = array<i64: 3, 128>}, {transform_indices = @transform_3, window_bounds = array<i64: 8, 128>}]} {
    %c0 = arith.constant 0 : index
    %c0_0 = arith.constant 0 : index
    %0 = vector.load %arg1[%c0, %c0_0] : memref<8x32xf32, #tpu.memory_space<vmem>>, vector<8x32xf32>
    %1 = arith.truncf %0 : vector<8x32xf32> to vector<8x32xbf16>
    %c0_1 = arith.constant 0 : index
    %c0_2 = arith.constant 0 : index
    %2 = vector.load %arg2[%c0_1, %c0_2] : memref<32x128xbf16, #tpu.memory_space<vmem>>, vector<32x128xbf16>
    %cst = arith.constant dense<0.000000e+00> : vector<8x128xf32>
    %3 = tpu.matmul %1, %2, %cst {dimension_numbers = #tpu.dot_dimension_numbers<[1], [0], [0], [1], [0, 0, 1, 1], [], []>} : vector<8x32xbf16>, vector<32x128xbf16>, vector<8x128xf32> -> vector<8x128xf32>
    %c0_3 = arith.constant 0 : index
    %c0_4 = arith.constant 0 : index
    %4 = vector.load %arg3[%c0_3, %c0_4] : memref<3x128xf32, #tpu.memory_space<vmem>>, vector<1x128xf32>
    %5 = vector.broadcast %4 : vector<1x128xf32> to vector<8x128xf32>
    %6 = arith.addf %3, %5 : vector<8x128xf32>
    %cst_5 = arith.constant dense<0.000000e+00> : vector<8xf32>
    %7 = vector.multi_reduction <add>, %6, %cst_5 [1] : vector<8x128xf32> to vector<8xf32>
    %8 = vector.shape_cast %7 : vector<8xf32> to vector<8x1xf32>
    %9 = arith.mulf %6, %6 : vector<8x128xf32>
    %cst_6 = arith.constant dense<0.000000e+00> : vector<8xf32>
    %10 = vector.multi_reduction <add>, %9, %cst_6 [1] : vector<8x128xf32> to vector<8xf32>
    %11 = vector.shape_cast %10 : vector<8xf32> to vector<8x1xf32>
    %cst_7 = arith.constant 7.812500e-03 : f32
    %12 = vector.broadcast %cst_7 : f32 to vector<8x1xf32>
    %13 = arith.mulf %8, %12 : vector<8x1xf32>
    %cst_8 = arith.constant 7.812500e-03 : f32
    %14 = vector.broadcast %cst_8 : f32 to vector<8x1xf32>
    %15 = arith.mulf %11, %14 : vector<8x1xf32>
    %16 = arith.mulf %13, %13 : vector<8x1xf32>
    %17 = arith.subf %15, %16 : vector<8x1xf32>
    %cst_9 = arith.constant 0.000000e+00 : f32
    %18 = vector.broadcast %cst_9 : f32 to vector<8x1xf32>
    %19 = arith.maximumf %17, %18 : vector<8x1xf32>
    %cst_10 = arith.constant 9.99999974E-6 : f32
    %20 = vector.broadcast %cst_10 : f32 to vector<8x1xf32>
    %21 = arith.addf %19, %20 : vector<8x1xf32>
    %22 = math.rsqrt %21 : vector<8x1xf32>
    %c1 = arith.constant 1 : index
    %c0_11 = arith.constant 0 : index
    %23 = vector.load %arg3[%c1, %c0_11] : memref<3x128xf32, #tpu.memory_space<vmem>>, vector<1x128xf32>
    %24 = vector.broadcast %22 : vector<8x1xf32> to vector<8x128xf32>
    %25 = vector.broadcast %23 : vector<1x128xf32> to vector<8x128xf32>
    %26 = arith.mulf %24, %25 : vector<8x128xf32>
    %27 = vector.broadcast %13 : vector<8x1xf32> to vector<8x128xf32>
    %28 = arith.subf %6, %27 : vector<8x128xf32>
    %29 = arith.mulf %28, %26 : vector<8x128xf32>
    %c2 = arith.constant 2 : index
    %c0_12 = arith.constant 0 : index
    %30 = vector.load %arg3[%c2, %c0_12] : memref<3x128xf32, #tpu.memory_space<vmem>>, vector<1x128xf32>
    %31 = vector.broadcast %30 : vector<1x128xf32> to vector<8x128xf32>
    %32 = arith.addf %29, %31 : vector<8x128xf32>
    %33 = math.tanh %32 : vector<8x128xf32>
    %c0_13 = arith.constant 0 : index
    %c0_14 = arith.constant 0 : index
    %34 = vector.load %arg4[%c0_13, %c0_14] : memref<8x128xf32, #tpu.memory_space<vmem>>, vector<8x128xf32>
    tpu.vector_store %arg4[%c0_13, %c0_14], %33 {strides = array<i32>} : memref<8x128xf32, #tpu.memory_space<vmem>>, vector<8x128xf32>,
    return
  }
  func.func @transform_0(%arg0: i32) -> (i32, i32) {
    %c0_i32 = arith.constant 0 : i32
    %c0_i32_0 = arith.constant 0 : i32
    return %arg0, %c0_i32 : i32, i32
  }
  func.func @transform_1(%arg0: i32) -> (i32, i32) {
    %c0_i32 = arith.constant 0 : i32
    %c0_i32_0 = arith.constant 0 : i32
    %c0_i32_1 = arith.constant 0 : i32
    return %c0_i32, %c0_i32_0 : i32, i32
  }
  func.func @transform_2(%arg0: i32) -> (i32, i32) {
    %c0_i32 = arith.constant 0 : i32
    %c0_i32_0 = arith.constant 0 : i32
    %c0_i32_1 = arith.constant 0 : i32
    return %c0_i32, %c0_i32_0 : i32, i32
  }
  func.func @transform_3(%arg0: i32) -> (i32, i32) {
    %c0_i32 = arith.constant 0 : i32
    %c0_i32_0 = arith.constant 0 : i32
    return %arg0, %c0_i32 : i32, i32
  }
}

</mosaic_0001>

<llo_original>
// kernel: tpu_custom_call.1
$region0: #{tpu_custom_call.1}
  #allocation0 [shape = 'u32[]', space=smem, size = 0x4, offset = 0x4, fixed_abs, tag = 'smem constant byte address 0x4 - core index']
  #allocation1 [shape = 'u32[72,128]{1,0:T(1,128)}', space=vmem, size = 0x9000, scoped, tag = 'internal scratch']
  %s0 = inlined_call_operand.hbm [shape: f32[8,32], index: 0, kind: input, shape index: {}]
  %s1 = inlined_call_operand.hbm [shape: bf16[32,128], index: 1, kind: input, shape index: {}]
  %s2 = inlined_call_operand.hbm [shape: f32[3,128], index: 2, kind: input, shape index: {}]
  %s3 = inlined_call_operand.hbm [shape: f32[8,128], index: 3, kind: output, shape index: {}]
  %s4 = sld [smem:[#allocation0]]
  $region34: #{tpu_custom_call.1} parent=0
    _
  %s6 = ssub.s32 1, %s4
  %s7 = scalar_select 0, %s6, %s4
  $region1: #{tpu_custom_call.1} parent=0
    #allocation2 [shape = 'u8[4096]{0}', space=vmem, size = 0x1000, scoped, tag = 'input window, operand 0, single buffered']
    #allocation3 [shape = 's32[1]{0}', space=sflag, size = 0x4, scoped, tag = 'scoped memory for tpu_custom_call.1']
    #allocation4 [shape = 's32[1]{0}', space=sflag, size = 0x4, scoped, tag = 'scoped memory for tpu_custom_call.1']
    #allocation5 [shape = 'u8[8192]{0}', space=vmem, size = 0x2000, scoped, tag = 'input window, operand 1, single buffered']
    #allocation6 [shape = 's32[1]{0}', space=sflag, size = 0x4, scoped, tag = 'scoped memory for tpu_custom_call.1']
    #allocation7 [shape = 'u8[2048]{0}', space=vmem, size = 0x800, scoped, tag = 'input window, operand 2, single buffered']
    #allocation8 [shape = 'u8[4096]{0}', space=vmem, size = 0x1000, scoped, tag = 'output window, operand 0, single buffered']
    %8 = vsyncpa [#allocation3], 0
    %9 = vsyncpa [#allocation6], 0
    %10 = vsyncpa [#allocation4], 0
    // Predicated region
    $region2: #{tpu_custom_call.1} parent=1 // pred_check
      _
    $region3: #{tpu_custom_call.1} parent=1 // pred_check_branch
      %12 = sbr.rel (0) target = $region5
    $region4: #{tpu_custom_call.1} parent=1 // pred_region
      %14 = vsyncadd [#allocation3], 0
      %s16 = sshll.u32 %s0, 4
      %s17 = int_to_ptr.hbm [resolvable:$true] %s16
      %s18 = sshll.u32 [#allocation2], 4
      %s19 = int_to_ptr.vmem [resolvable:$true] %s18
      %21 = dma.hbm_to_vmem [thread:$0]  %s17, 128, %s19, [#allocation3]
    $region5: #{tpu_custom_call.1} parent=1 // pred_fallthru
      _
    // Predicated region
    $region6: #{tpu_custom_call.1} parent=1 // pred_check
      _
    $region7: #{tpu_custom_call.1} parent=1 // pred_check_branch
      %23 = sbr.rel (0) target = $region9
    $region8: #{tpu_custom_call.1} parent=1 // pred_region
      %25 = vsyncadd [#allocation6], 0
      %s26 = sshll.u32 %s1, 4
      %s27 = int_to_ptr.hbm [resolvable:$true] %s26
      %s28 = sshll.u32 [#allocation5], 4
      %s29 = int_to_ptr.vmem [resolvable:$true] %s28
      %34 = dma.hbm_to_vmem [thread:$0]  %s27, 256, %s29, [#allocation6], 64, 64, 4
    $region9: #{tpu_custom_call.1} parent=1 // pred_fallthru
      _
    // Predicated region
    $region10: #{tpu_custom_call.1} parent=1 // pred_check
      _
    $region11: #{tpu_custom_call.1} parent=1 // pred_check_branch
      %36 = sbr.rel (0) target = $region13
    $region12: #{tpu_custom_call.1} parent=1 // pred_region
      %38 = vsyncadd [#allocation6], 0
      %s40 = sshll.u32 %s2, 4
      %s41 = int_to_ptr.hbm [resolvable:$true] %s40
      %s42 = sshll.u32 [#allocation7], 4
      %s43 = int_to_ptr.vmem [resolvable:$true] %s42
      %45 = dma.hbm_to_vmem [thread:$0]  %s41, 64, %s43, [#allocation6]
    $region13: #{tpu_custom_call.1} parent=1 // pred_fallthru
      _
    // Predicated region
    $region14: #{tpu_custom_call.1} parent=1 // pred_check
      _
    $region15: #{tpu_custom_call.1} parent=1 // pred_check_branch
      %47 = sbr.rel (0) target = $region17
    $region16: #{tpu_custom_call.1} parent=1 // pred_region
      %49 = dma.done [#allocation3], 128
    $region17: #{tpu_custom_call.1} parent=1 // pred_fallthru
      _
    // Predicated region
    $region18: #{tpu_custom_call.1} parent=1 // pred_check
      _
    $region19: #{tpu_custom_call.1} parent=1 // pred_check_branch
      %51 = sbr.rel (0) target = $region21
    $region20: #{tpu_custom_call.1} parent=1 // pred_region
      %53 = dma.done [#allocation6], 256
    $region21: #{tpu_custom_call.1} parent=1 // pred_fallthru
      _
    // Predicated region
    $region22: #{tpu_custom_call.1} parent=1 // pred_check
      _
    $region23: #{tpu_custom_call.1} parent=1 // pred_check_branch
      %55 = sbr.rel (0) target = $region25
    $region24: #{tpu_custom_call.1} parent=1 // pred_region
      %57 = dma.done [#allocation6], 64
    $region25: #{tpu_custom_call.1} parent=1 // pred_fallthru
      _
    %v59 = vld [vmem:[#allocation2] sm:$0xff]
    %v60 = vpack.c.bf16 %v59, %v59
    %v61 = vld [vmem:[#allocation5] sm:$0xf]
    %v62 = vld [vmem:[#allocation5 + $0x4] sm:$0xf]
    %v63 = vld [vmem:[#allocation5 + $0x8] sm:$0xf]
    %v64 = vld [vmem:[#allocation5 + $0xc] sm:$0xf]
    %v65 = vld [vmem:[#allocation7] sm:$0x1]
    %v66 = vperm.slane %v65, 0
    %v71 = vunpack.c.l.b16 %v61
    %v72 = vunpack.c.l.b16 %v62
    %v73 = vunpack.c.l.b16 %v63
    %v74 = vunpack.c.l.b16 %v64
    %v75 = vpack.c.b16 %v72, %v71
    %v76 = vpack.c.b16 %v74, %v73
    %vm79 = vcmask 261120
    %v81 = vsel %vm79, %v60, 0
    %83 = vmatpush.bf16.msra.mxu0 0
    %84 = vmatpush.bf16.msra.mxu0 0
    %85 = vmatpush.bf16.msra.mxu0 0
    %86 = vmatpush.bf16.msra.mxu0 0
    %87 = vmatpush.bf16.msra.mxu0 0
    %88 = vmatpush.bf16.msra.mxu0 0
    %89 = vmatpush.bf16.msra.mxu0 %v76
    %90 = vmatpush.bf16.msra.mxu0 %v75
    %91 = vmatmul.bf16.gmra.mxu0 %v81
    %v92 = vpop.f32.mrf.mxu0
    %v93 = vadd.f32 %v66, %v92
    %v94 = vpop.f32.mrf.mxu0
    %95 = vdwg.mxu0
    %96 = vadd.xlane.f32.xlu0 %v93
    %v97 = vpop.xlane.xlu0 %96
    %v98 = vmul.f32 %v93, %v93
    %99 = vadd.xlane.f32.xlu0 %v98
    %v100 = vpop.xlane.xlu0 %99
    %v101 = vmul.f32 %v97, 0.0078125
    %v102 = vmul.f32 %v100, 0.0078125
    %v103 = vmul.f32 %v101, %v101
    %v104 = vsub.f32 %v102, %v103
    %v105 = vmax.f32 %v104, 0.0
    %v106 = vadd.f32 %v105, 1e-05
    %v107 = vrsqrt.pop %v106
    %v108 = vmul.f32 %v107, %v106
    %v109 = vmul.f32 %v108, %v107
    %v110 = vmul.f32 0.5, %v109
    %v111 = vsub.f32 1.5, %v110
    %v112 = vmul.f32 %v107, %v111
    %vm113 = vweird.f32 %v106
    %vm114 = vweird.f32 %v107
    %vm115 = vmor %vm113, %vm114
    %v116 = vsel %vm115, %v107, %v112
    %v117 = vld [vmem:[#allocation7 + $0x1] sm:$0x1]
    %v118 = vperm.slane %v117, 0
    %v119 = vmul.f32 %v116, %v118
    %v120 = vsub.f32 %v93, %v101
    %v121 = vmul.f32 %v120, %v119
    %v122 = vld [vmem:[#allocation7 + $0x2] sm:$0x1]
    %v123 = vperm.slane %v122, 0
    %v124 = vadd.f32 %v121, %v123
    %v125 = vtanh.pop %v124
    %126 = vst [vmem:[#allocation8] sm:$0xff] %v125
    // Predicated region
    $region26: #{tpu_custom_call.1} parent=1 // pred_check
      _
    $region27: #{tpu_custom_call.1} parent=1 // pred_check_branch
      %128 = sbr.rel (0) target = $region29
    $region28: #{tpu_custom_call.1} parent=1 // pred_region
      %130 = vsyncadd [#allocation4], 0
      %s132 = sshll.u32 [#allocation8], 4
      %s133 = int_to_ptr.vmem [resolvable:$true] %s132
      %s134 = sshll.u32 %s3, 4
      %s135 = int_to_ptr.hbm [resolvable:$true] %s134
      %137 = dma.vmem_to_hbm [thread:$0]  %s133, 128, %s135, [#allocation4]
    $region29: #{tpu_custom_call.1} parent=1 // pred_fallthru
      _
    // Predicated region
    $region30: #{tpu_custom_call.1} parent=1 // pred_check
      _
    $region31: #{tpu_custom_call.1} parent=1 // pred_check_branch
      %139 = sbr.rel (0) target = $region33
    $region32: #{tpu_custom_call.1} parent=1 // pred_region
      %141 = dma.done [#allocation4], 128
    $region33: #{tpu_custom_call.1} parent=1 // pred_fallthru
      _
    %142 = vsyncpa [#allocation3], 1
    %143 = vsyncpa [#allocation6], 1
    %144 = vsyncpa [#allocation4], 1

</llo_original>
